<compile_context>
chip_gen: v6e
topology: v6e:2x2x1
jax: 0.10.0
libtpu: 0.0.40
codegen_flags: <defaults>
</compile_context>

<pallas_src>
import functools

import jax
import jax.numpy as jnp
from jax import lax
from jax.experimental import pallas as pl
from jax.experimental.pallas import tpu as pltpu

LN_EPS = 1e-5  # nn.LayerNorm default


def _round_up(x, m):
    return ((x + m - 1) // m) * m


def _ffn_kernel(x_ref, w1_ref, w2_ref, gamma_ref, beta_ref, o_ref, acc_ref,
                *, d_in_true):
    """grid = (row_tiles, hidden_chunks); hidden axis is the reduction ('arbitrary')."""
    k = pl.program_id(1)

    @pl.when(k == 0)
    def _():
        acc_ref[...] = jnp.zeros_like(acc_ref)

    x = x_ref[...]                                          # [tm, d_in_p], native dtype

    # h = relu(x @ W1_chunk); W1 chunk is already [d_in_p, tk_h] (standard K,N feed).
    h = jnp.dot(x, w1_ref[...], preferred_element_type=jnp.float32)
    h = jnp.maximum(h, 0.0).astype(w2_ref.dtype)            # [tm, tk_h] back to MXU dtype

    # acc += h @ W2_chunk; W2 chunk is [tk_h, d_in_p]. f32 accumulator persists over k.
    acc_ref[...] += jnp.dot(h, w2_ref[...], preferred_element_type=jnp.float32)

    # TODO(synk): dropout is identity in eval mode; training-mode dropout would need
    # pltpu.prng_seed / pltpu.prng_random_bits and a seed input.

    @pl.when(k == pl.num_programs(1) - 1)
    def _():
        out = acc_ref[...] + x.astype(jnp.float32)          # residual add, f32
        # One-pass LN stats over the TRUE model dim; padded lanes are exactly zero.
        inv_n = jnp.float32(1.0 / d_in_true)
        mean = jnp.sum(out, axis=-1, keepdims=True) * inv_n
        msq = jnp.sum(out * out, axis=-1, keepdims=True) * inv_n
        var = jnp.maximum(msq - mean * mean, 0.0)
        inv = lax.rsqrt(var + LN_EPS)                       # EUP rsqrt
        y = (out - mean) * inv * gamma_ref[...].astype(jnp.float32) \
            + beta_ref[...].astype(jnp.float32)
        o_ref[...] = y.astype(o_ref.dtype)


def _vmem_limit_bytes():
    cap = 64 * 1024 * 1024  # conservative fallback (v7x per-TC VMEM)
    try:
        cap = int(pltpu.get_tpu_info().vmem_capacity_bytes)
    except Exception:
        pass
    # Leave ~8 MiB headroom for Mosaic internal scratch; ~110 MiB ceiling on 128-MiB parts.
    return max(32 * 1024 * 1024, min(cap - 8 * 1024 * 1024, 110 * 1024 * 1024))


@functools.partial(jax.jit, static_argnames=("tm",))
def positionwise_feed_forward(x, w1, w2, gamma, beta, *, tm=512):
    """x: [B,S,d_in]; w1: [d_hid,d_in]; w2: [d_in,d_hid]; gamma/beta: [d_in]."""
    B, S, d_in = x.shape
    d_hid = w1.shape[0]
    M = B * S

    # Lane-dense model dim: pad d_in up to a multiple of 128.
    d_in_p = _round_up(d_in, 128)

    # Row tile: multiple of 8, >=2 grid steps when possible (megacore / 2 TCs on v7x),
    # and avoid rounding Mp up by a near-full tile for awkward M.
    tm_eff = max(8, _round_up(min(tm, _round_up(M, 8)), 8))
    while tm_eff > 8 and pl.cdiv(M, tm_eff) < 2:
        tm_eff = max(8, _round_up(tm_eff // 2, 8))
    while tm_eff > 8 and (_round_up(M, tm_eff) - M) * 4 > M:
        tm_eff = max(8, _round_up(tm_eff // 2, 8))
    Mp = _round_up(M, tm_eff)

    # Hidden chunk: stream W1/W2 in [d_in_p, tk_h] / [tk_h, d_in_p] slices.
    # Cap each streamed (double-buffered) weight chunk at ~4 MiB of VMEM.
    itemsize = jnp.dtype(w1.dtype).itemsize
    max_tk = max(128, (4 * 1024 * 1024 // (d_in_p * itemsize)) // 128 * 128)
    d_hid_128 = _round_up(d_hid, 128)
    if d_hid_128 <= max_tk:
        tk_h = d_hid_128                       # single chunk
    else:
        tk_h = (max_tk // 256) * 256 if max_tk >= 256 else 128  # 256-align for v6e/v7x MXU
    d_hid_p = _round_up(d_hid, tk_h)
    n_k = d_hid_p // tk_h

    # ---- pad activations / weights / affine params ---------------------------
    x2d = x.reshape(M, d_in)
    if Mp != M or d_in_p != d_in:
        x2d = jnp.pad(x2d, ((0, Mp - M), (0, d_in_p - d_in)))

    # Pre-transpose ONCE (amortized over all row tiles): standard [K, N] MXU feed.
    w1t = w1.T                                  # [d_in, d_hid]
    w2t = w2.T                                  # [d_hid, d_in]
    if d_in_p != d_in or d_hid_p != d_hid:
        w1t = jnp.pad(w1t, ((0, d_in_p - d_in), (0, d_hid_p - d_hid)))
        w2t = jnp.pad(w2t, ((0, d_hid_p - d_hid), (0, d_in_p - d_in)))

    gamma2d = jnp.pad(gamma, (0, d_in_p - d_in)).reshape(1, d_in_p)
    beta2d = jnp.pad(beta, (0, d_in_p - d_in)).reshape(1, d_in_p)

    kernel = functools.partial(_ffn_kernel, d_in_true=float(d_in))

    flops = 4 * Mp * d_in_p * d_hid_p           # two matmuls, 2*M*K*N each
    bytes_accessed = (
        Mp * d_in_p * x2d.dtype.itemsize        # x in
        + d_in_p * d_hid_p * w1t.dtype.itemsize # W1
        + d_hid_p * d_in_p * w2t.dtype.itemsize # W2
        + Mp * d_in_p * x.dtype.itemsize        # out
    )

    out2d = pl.pallas_call(
        kernel,
        out_shape=jax.ShapeDtypeStruct((Mp, d_in_p), x.dtype),
        grid_spec=pltpu.PrefetchScalarGridSpec(
            num_scalar_prefetch=0,
            grid=(Mp // tm_eff, n_k),
            in_specs=[
                pl.BlockSpec((tm_eff, d_in_p), lambda i, k: (i, 0)),   # x tile (resident over k)
                pl.BlockSpec((d_in_p, tk_h), lambda i, k: (0, k)),     # W1 chunk (streamed)
                pl.BlockSpec((tk_h, d_in_p), lambda i, k: (k, 0)),     # W2 chunk (streamed)
                pl.BlockSpec((1, d_in_p), lambda i, k: (0, 0)),        # gamma (resident)
                pl.BlockSpec((1, d_in_p), lambda i, k: (0, 0)),        # beta  (resident)
            ],
            out_specs=pl.BlockSpec((tm_eff, d_in_p), lambda i, k: (i, 0)),
            scratch_shapes=[pltpu.VMEM((tm_eff, d_in_p), jnp.float32)],
        ),
        compiler_params=pltpu.CompilerParams(
            dimension_semantics=("parallel", "arbitrary"),
            vmem_limit_bytes=_vmem_limit_bytes(),
        ),
        cost_estimate=pl.CostEstimate(
            flops=flops, transcendentals=Mp, bytes_accessed=bytes_accessed),
    )(x2d, w1t, w2t, gamma2d, beta2d)

    return out2d[:M, :d_in].reshape(B, S, d_in)


if __name__ == "__main__":
    B, S, d_in, d_hid = 2, 8, 32, 64

    key = jax.random.PRNGKey(0)
    kx, kw1, kw2 = jax.random.split(key, 3)

    x = jax.random.normal(kx, (B, S, d_in), dtype=jnp.float32)
    # Deterministic "Kaiming-ish" init for the bias-free Linear weights (PyTorch layout).
    w1 = jax.random.normal(kw1, (d_hid, d_in), dtype=jnp.float32) * (1.0 / jnp.sqrt(d_in))
    w2 = jax.random.normal(kw2, (d_in, d_hid), dtype=jnp.float32) * (1.0 / jnp.sqrt(d_hid))
    # LayerNorm affine params at PyTorch default init.
    gamma = jnp.ones((d_in,), dtype=jnp.float32)
    beta = jnp.zeros((d_in,), dtype=jnp.float32)

    out = positionwise_feed_forward(x, w1, w2, gamma, beta)
    jax.block_until_ready(out)

    # Pure-JAX reference (eval-mode dropout == identity).
    h_ref = jnp.maximum(x @ w1.T, 0.0)
    o_res = h_ref @ w2.T + x
    mu = o_res.mean(-1, keepdims=True)
    var = ((o_res - mu) ** 2).mean(-1, keepdims=True)
    ref = (o_res - mu) / jnp.sqrt(var + LN_EPS) * gamma + beta
    assert jnp.allclose(out, ref, atol=1e-4, rtol=1e-4), "mismatch vs reference"

    print("KERNEL_OK")
</pallas_src>

<mosaic_0001>
module attributes {stable_mosaic.version = 11 : i64} {
  func.func @_ffn_kernel(%arg0: i32, %arg1: i32, %arg2: memref<8x128xf32, #tpu.memory_space<vmem>>, %arg3: memref<128x128xf32, #tpu.memory_space<vmem>>, %arg4: memref<128x128xf32, #tpu.memory_space<vmem>>, %arg5: memref<1x128xf32, #tpu.memory_space<vmem>>, %arg6: memref<1x128xf32, #tpu.memory_space<vmem>>, %arg7: memref<8x128xf32, #tpu.memory_space<vmem>>, %arg8: memref<8x128xf32, #tpu.memory_space<vmem>>) attributes {dimension_semantics = [#tpu.dimension_semantics<parallel>, #tpu.dimension_semantics<arbitrary>], iteration_bounds = array<i64: 2, 1>, scalar_prefetch = 0 : i64, scratch_operands = 1 : i64, tpu.core_type = #tpu.core_type<tc>, window_params = [{transform_indices = @transform_0, window_bounds = array<i64: 8, 128>}, {transform_indices = @transform_1, window_bounds = array<i64: 128, 128>}, {transform_indices = @transform_2, window_bounds = array<i64: 128, 128>}, {pipeline_mode = #tpu.pipeline_mode<synchronous>, transform_indices = @transform_3, window_bounds = array<i64: 1, 128>}, {pipeline_mode = #tpu.pipeline_mode<synchronous>, transform_indices = @transform_4, window_bounds = array<i64: 1, 128>}, {transform_indices = @transform_5, window_bounds = array<i64: 8, 128>}]} {
    %c0_i32 = arith.constant 0 : i32
    %0 = arith.cmpi eq, %arg1, %c0_i32 : i32
    %1 = arith.extui %0 : i1 to i32
    %c0_i32_0 = arith.constant 0 : i32
    %2 = arith.cmpi ne, %1, %c0_i32_0 : i32
    scf.if %2 {
      %cst_14 = arith.constant 0.000000e+00 : f32
      %16 = vector.broadcast %cst_14 : f32 to vector<8x128xf32>
      %c0_15 = arith.constant 0 : index
      %c0_16 = arith.constant 0 : index
      %17 = vector.load %arg8[%c0_15, %c0_16] : memref<8x128xf32, #tpu.memory_space<vmem>>, vector<8x128xf32>
      tpu.vector_store %arg8[%c0_15, %c0_16], %16 {strides = array<i32>} : memref<8x128xf32, #tpu.memory_space<vmem>>, vector<8x128xf32>,
    } else {
    }
    %c0 = arith.constant 0 : index
    %c0_1 = arith.constant 0 : index
    %3 = vector.load %arg2[%c0, %c0_1] : memref<8x128xf32, #tpu.memory_space<vmem>>, vector<8x128xf32>
    %c0_2 = arith.constant 0 : index
    %c0_3 = arith.constant 0 : index
    %4 = vector.load %arg3[%c0_2, %c0_3] : memref<128x128xf32, #tpu.memory_space<vmem>>, vector<128x128xf32>
    %cst = arith.constant dense<0.000000e+00> : vector<8x128xf32>
    %5 = tpu.matmul %3, %4, %cst {dimension_numbers = #tpu.dot_dimension_numbers<[1], [0], [0], [1], [0, 0, 1, 1], [], []>} : vector<8x128xf32>, vector<128x128xf32>, vector<8x128xf32> -> vector<8x128xf32>
    %cst_4 = arith.constant 0.000000e+00 : f32
    %6 = vector.broadcast %cst_4 : f32 to vector<8x128xf32>
    %7 = arith.maximumf %5, %6 : vector<8x128xf32>
    %c0_5 = arith.constant 0 : index
    %c0_6 = arith.constant 0 : index
    %8 = vector.load %arg8[%c0_5, %c0_6] : memref<8x128xf32, #tpu.memory_space<vmem>>, vector<8x128xf32>
    %c0_7 = arith.constant 0 : index
    %c0_8 = arith.constant 0 : index
    %9 = vector.load %arg4[%c0_7, %c0_8] : memref<128x128xf32, #tpu.memory_space<vmem>>, vector<128x128xf32>
    %cst_9 = arith.constant dense<0.000000e+00> : vector<8x128xf32>
    %10 = tpu.matmul %7, %9, %cst_9 {dimension_numbers = #tpu.dot_dimension_numbers<[1], [0], [0], [1], [0, 0, 1, 1], [], []>} : vector<8x128xf32>, vector<128x128xf32>, vector<8x128xf32> -> vector<8x128xf32>
    %11 = arith.addf %8, %10 : vector<8x128xf32>
    %c0_10 = arith.constant 0 : index
    %c0_11 = arith.constant 0 : index
    %12 = vector.load %arg8[%c0_10, %c0_11] : memref<8x128xf32, #tpu.memory_space<vmem>>, vector<8x128xf32>
    tpu.vector_store %arg8[%c0_10, %c0_11], %11 {strides = array<i32>} : memref<8x128xf32, #tpu.memory_space<vmem>>, vector<8x128xf32>,
    %c0_i32_12 = arith.constant 0 : i32
    %13 = arith.cmpi eq, %arg1, %c0_i32_12 : i32
    %14 = arith.extui %13 : i1 to i32
    %c0_i32_13 = arith.constant 0 : i32
    %15 = arith.cmpi ne, %14, %c0_i32_13 : i32
    scf.if %15 {
      %c0_14 = arith.constant 0 : index
      %c0_15 = arith.constant 0 : index
      %16 = vector.load %arg8[%c0_14, %c0_15] : memref<8x128xf32, #tpu.memory_space<vmem>>, vector<8x128xf32>
      %17 = arith.addf %16, %3 : vector<8x128xf32>
      %cst_16 = arith.constant dense<0.000000e+00> : vector<8xf32>
      %18 = vector.multi_reduction <add>, %17, %cst_16 [1] : vector<8x128xf32> to vector<8xf32>
      %19 = vector.shape_cast %18 : vector<8xf32> to vector<8x1xf32>
      %cst_17 = arith.constant 3.125000e-02 : f32
      %20 = vector.broadcast %cst_17 : f32 to vector<8x1xf32>
      %21 = arith.mulf %19, %20 : vector<8x1xf32>
      %22 = arith.mulf %17, %17 : vector<8x128xf32>
      %cst_18 = arith.constant dense<0.000000e+00> : vector<8xf32>
      %23 = vector.multi_reduction <add>, %22, %cst_18 [1] : vector<8x128xf32> to vector<8xf32>
      %24 = vector.shape_cast %23 : vector<8xf32> to vector<8x1xf32>
      %cst_19 = arith.constant 3.125000e-02 : f32
      %25 = vector.broadcast %cst_19 : f32 to vector<8x1xf32>
      %26 = arith.mulf %24, %25 : vector<8x1xf32>
      %27 = arith.mulf %21, %21 : vector<8x1xf32>
      %28 = arith.subf %26, %27 : vector<8x1xf32>
      %cst_20 = arith.constant 0.000000e+00 : f32
      %29 = vector.broadcast %cst_20 : f32 to vector<8x1xf32>
      %30 = arith.maximumf %28, %29 : vector<8x1xf32>
      %cst_21 = arith.constant 9.99999974E-6 : f32
      %31 = vector.broadcast %cst_21 : f32 to vector<8x1xf32>
      %32 = arith.addf %30, %31 : vector<8x1xf32>
      %33 = math.rsqrt %32 : vector<8x1xf32>
      %34 = vector.broadcast %21 : vector<8x1xf32> to vector<8x128xf32>
      %35 = arith.subf %17, %34 : vector<8x128xf32>
      %36 = vector.broadcast %33 : vector<8x1xf32> to vector<8x128xf32>
      %37 = arith.mulf %35, %36 : vector<8x128xf32>
      %c0_22 = arith.constant 0 : index
      %c0_23 = arith.constant 0 : index
      %38 = vector.load %arg5[%c0_22, %c0_23] : memref<1x128xf32, #tpu.memory_space<vmem>>, vector<1x128xf32>
      %39 = vector.broadcast %38 : vector<1x128xf32> to vector<8x128xf32>
      %40 = arith.mulf %37, %39 : vector<8x128xf32>
      %c0_24 = arith.constant 0 : index
      %c0_25 = arith.constant 0 : index
      %41 = vector.load %arg6[%c0_24, %c0_25] : memref<1x128xf32, #tpu.memory_space<vmem>>, vector<1x128xf32>
      %42 = vector.broadcast %41 : vector<1x128xf32> to vector<8x128xf32>
      %43 = arith.addf %40, %42 : vector<8x128xf32>
      %c0_26 = arith.constant 0 : index
      %c0_27 = arith.constant 0 : index
      %44 = vector.load %arg7[%c0_26, %c0_27] : memref<8x128xf32, #tpu.memory_space<vmem>>, vector<8x128xf32>
      tpu.vector_store %arg7[%c0_26, %c0_27], %43 {strides = array<i32>} : memref<8x128xf32, #tpu.memory_space<vmem>>, vector<8x128xf32>,
    } else {
    }
    return
  }
  func.func @transform_0(%arg0: i32, %arg1: i32) -> (i32, i32) {
    %c0_i32 = arith.constant 0 : i32
    %c0_i32_0 = arith.constant 0 : i32
    return %arg0, %c0_i32 : i32, i32
  }
  func.func @transform_1(%arg0: i32, %arg1: i32) -> (i32, i32) {
    %c0_i32 = arith.constant 0 : i32
    %c0_i32_0 = arith.constant 0 : i32
    return %c0_i32, %arg1 : i32, i32
  }
  func.func @transform_2(%arg0: i32, %arg1: i32) -> (i32, i32) {
    %c0_i32 = arith.constant 0 : i32
    %c0_i32_0 = arith.constant 0 : i32
    return %arg1, %c0_i32 : i32, i32
  }
  func.func @transform_3(%arg0: i32, %arg1: i32) -> (i32, i32) {
    %c0_i32 = arith.constant 0 : i32
    %c0_i32_0 = arith.constant 0 : i32
    %c0_i32_1 = arith.constant 0 : i32
    return %c0_i32, %c0_i32_0 : i32, i32
  }
  func.func @transform_4(%arg0: i32, %arg1: i32) -> (i32, i32) {
    %c0_i32 = arith.constant 0 : i32
    %c0_i32_0 = arith.constant 0 : i32
    %c0_i32_1 = arith.constant 0 : i32
    return %c0_i32, %c0_i32_0 : i32, i32
  }
  func.func @transform_5(%arg0: i32, %arg1: i32) -> (i32, i32) {
    %c0_i32 = arith.constant 0 : i32
    %c0_i32_0 = arith.constant 0 : i32
    return %arg0, %c0_i32 : i32, i32
  }
}

</mosaic_0001>

<llo_original>
// kernel: positionwise_feed_forward.1
$region0: #{positionwise_feed_forward.1}
  #allocation0 [shape = 'u32[]', space=smem, size = 0x4, offset = 0x4, fixed_abs, tag = 'smem constant byte address 0x4 - core index']
  #allocation1 [shape = 'u32[144,128]{1,0:T(1,128)}', space=vmem, size = 0x12000, scoped, tag = 'internal scratch']
  #allocation2 [shape = 'f32[8,128]{1,0:T(8,128)}', space=vmem, size = 0x1000, scoped, tag = 'scratch operand']
  %s0 = inlined_call_operand.vmem [shape: f32[16,128], index: 0, kind: input, shape index: {}]
  %s1 = inlined_call_operand.vmem [shape: f32[128,128], index: 1, kind: input, shape index: {}]
  %s2 = inlined_call_operand.vmem [shape: f32[128,128], index: 2, kind: input, shape index: {}]
  %s3 = inlined_call_operand.vmem [shape: f32[1,128], index: 3, kind: input, shape index: {}]
  %s4 = inlined_call_operand.vmem [shape: f32[1,128], index: 4, kind: input, shape index: {}]
  %s5 = inlined_call_operand.vmem [shape: f32[16,128], index: 5, kind: output, shape index: {}]
  %s6 = sld [smem:[#allocation0]]
  $region61: #{positionwise_feed_forward.1} parent=0
    _
  %s8 = ssub.s32 1, %s6
  %s9 = scalar_select 0, %s8, %s6
  loop: start=0, step=1, limit=4
  $region2: #{positionwise_feed_forward.1} parent=0 // loop_pre_header
    _
  $region3: #{positionwise_feed_forward.1} parent=0 // loop_header
    %s11 = sphi 0, %s15
    %p12 = scmp.ge.s32.totalorder %s11, 4
    %s18 = sphi 0, %s30
    %s19 = sphi 0, %s26
    %s20 = sphi 0, %s18
    %s21 = sphi 0, %s19
    %s22 = sphi 0, %s20
    %s23 = sphi 0, %s21
    %s33 = sphi 0, %s35
    %s36 = sphi 0, %s33
    %s37 = sphi 0, %s36
    %s53 = sphi 0, %s37
    %s59 = sphi 0, %s61
    %s62 = sphi 0, %s59
    %s63 = sphi 0, %s62
    %s79 = sphi 0, %s63
    %s85 = sphi 0, %s87
    %s88 = sphi 0, %s85
    %s89 = sphi 0, %s88
    %s105 = sphi 0, %s89
    %s109 = sphi 0, %s109
    %s111 = sphi 0, %s109
    %s112 = sphi 0, %s111
    %s126 = sphi 0, %s112
    %s130 = sphi 0, %s130
    %s132 = sphi 0, %s130
    %s133 = sphi 0, %s132
    %s147 = sphi 0, %s133
    %s153 = sphi 0, %s155
    %s156 = sphi 0, %s153
    %s157 = sphi 0, %s156
    %s173 = sphi 0, %s157
  $region4: #{positionwise_feed_forward.1} parent=0 // loop_header_branch
    %14 = sbr.rel (%p12) target = $region8
  $region5: #{positionwise_feed_forward.1} parent=0 // loop_body
    %s16 = ssub.s32 %s11, 1
    %s17 = ssub.s32 %s11, 2
    %s24 = sadd.s32 1, %s19
    %p25 = scmp.ge.s32.totalorder %s24, 1
    %s26 = scalar_select %p25, 0, %s24
    %s27 = sadd.s32 1, %s18
    %s28 = scalar_select %p25, %s27, %s18
    %p29 = scmp.ge.s32.totalorder %s28, 2
    %s30 = scalar_select %p29, 0, %s28
    %s31 = ssub.s32 %s18, %s30
    %p32 = scmp.eq.s32.totalorder %s31, 0
    %s34 = sadd.s32 %s33, 1
    %s35 = scalar_select %p32, %s33, %s34
    %p38 = pneg %p32
    %p39 = scmp.eq.s32.totalorder %s11, 1
    %p40 = por %p38, %p39
    %p41 = scmp.ne.s32.totalorder %s33, %s36
    %p42 = scmp.eq.s32.totalorder %s11, 0
    %p43 = por %p41, %p42
    %p44 = scmp.ne.s32.totalorder %s33, %s36
    %p45 = scmp.eq.s32.totalorder %s16, 1
    %p46 = por %p44, %p45
    %p47 = scmp.ne.s32.totalorder %s36, %s37
    %p48 = scmp.eq.s32.totalorder %s16, 0
    %p49 = por %p47, %p48
    %p50 = scmp.ne.s32.totalorder %s36, %s37
    %p51 = scmp.eq.s32.totalorder %s17, 1
    %p52 = por %p50, %p51
    %p54 = scmp.ne.s32.totalorder %s37, %s53
    %p55 = scmp.eq.s32.totalorder %s17, 0
    %p56 = por %p54, %p55
    %s57 = ssub.s32 %s19, %s26
    %p58 = scmp.eq.s32.totalorder %s57, 0
    %s60 = sadd.s32 %s59, 1
    %s61 = scalar_select %p58, %s59, %s60
    %p64 = pneg %p58
    %p65 = scmp.eq.s32.totalorder %s11, 1
    %p66 = por %p64, %p65
    %p67 = scmp.ne.s32.totalorder %s59, %s62
    %p68 = scmp.eq.s32.totalorder %s11, 0
    %p69 = por %p67, %p68
    %p70 = scmp.ne.s32.totalorder %s59, %s62
    %p71 = scmp.eq.s32.totalorder %s16, 1
    %p72 = por %p70, %p71
    %p73 = scmp.ne.s32.totalorder %s62, %s63
    %p74 = scmp.eq.s32.totalorder %s16, 0
    %p75 = por %p73, %p74
    %p76 = scmp.ne.s32.totalorder %s62, %s63
    %p77 = scmp.eq.s32.totalorder %s17, 1
    %p78 = por %p76, %p77
    %p80 = scmp.ne.s32.totalorder %s63, %s79
    %p81 = scmp.eq.s32.totalorder %s17, 0
    %p82 = por %p80, %p81
    %s83 = ssub.s32 %s19, %s26
    %p84 = scmp.eq.s32.totalorder %s83, 0
    %s86 = sadd.s32 %s85, 1
    %s87 = scalar_select %p84, %s85, %s86
    %p90 = pneg %p84
    %p91 = scmp.eq.s32.totalorder %s11, 1
    %p92 = por %p90, %p91
    %p93 = scmp.ne.s32.totalorder %s85, %s88
    %p94 = scmp.eq.s32.totalorder %s11, 0
    %p95 = por %p93, %p94
    %p96 = scmp.ne.s32.totalorder %s85, %s88
    %p97 = scmp.eq.s32.totalorder %s16, 1
    %p98 = por %p96, %p97
    %p99 = scmp.ne.s32.totalorder %s88, %s89
    %p100 = scmp.eq.s32.totalorder %s16, 0
    %p101 = por %p99, %p100
    %p102 = scmp.ne.s32.totalorder %s88, %s89
    %p103 = scmp.eq.s32.totalorder %s17, 1
    %p104 = por %p102, %p103
    %p106 = scmp.ne.s32.totalorder %s89, %s105
    %p107 = scmp.eq.s32.totalorder %s17, 0
    %p108 = por %p106, %p107
    %s110 = sadd.s32 %s109, 1
    %p113 = scmp.eq.s32.totalorder %s11, 1
    %p114 = scmp.ne.s32.totalorder %s109, %s111
    %p115 = scmp.eq.s32.totalorder %s11, 0
    %p116 = por %p114, %p115
    %p117 = scmp.ne.s32.totalorder %s109, %s111
    %p118 = scmp.eq.s32.totalorder %s16, 1
    %p119 = por %p117, %p118
    %p120 = scmp.ne.s32.totalorder %s111, %s112
    %p121 = scmp.eq.s32.totalorder %s16, 0
    %p122 = por %p120, %p121
    %p123 = scmp.ne.s32.totalorder %s111, %s112
    %p124 = scmp.eq.s32.totalorder %s17, 1
    %p125 = por %p123, %p124
    %p127 = scmp.ne.s32.totalorder %s112, %s126
    %p128 = scmp.eq.s32.totalorder %s17, 0
    %p129 = por %p127, %p128
    %s131 = sadd.s32 %s130, 1
    %p134 = scmp.eq.s32.totalorder %s11, 1
    %p135 = scmp.ne.s32.totalorder %s130, %s132
    %p136 = scmp.eq.s32.totalorder %s11, 0
    %p137 = por %p135, %p136
    %p138 = scmp.ne.s32.totalorder %s130, %s132
    %p139 = scmp.eq.s32.totalorder %s16, 1
    %p140 = por %p138, %p139
    %p141 = scmp.ne.s32.totalorder %s132, %s133
    %p142 = scmp.eq.s32.totalorder %s16, 0
    %p143 = por %p141, %p142
    %p144 = scmp.ne.s32.totalorder %s132, %s133
    %p145 = scmp.eq.s32.totalorder %s17, 1
    %p146 = por %p144, %p145
    %p148 = scmp.ne.s32.totalorder %s133, %s147
    %p149 = scmp.eq.s32.totalorder %s17, 0
    %p150 = por %p148, %p149
    %s151 = ssub.s32 %s18, %s30
    %p152 = scmp.eq.s32.totalorder %s151, 0
    %s154 = sadd.s32 %s153, 1
    %s155 = scalar_select %p152, %s153, %s154
    %p158 = pneg %p152
    %p159 = scmp.eq.s32.totalorder %s11, 1
    %p160 = por %p158, %p159
    %p161 = scmp.ne.s32.totalorder %s153, %s156
    %p162 = scmp.eq.s32.totalorder %s11, 0
    %p163 = por %p161, %p162
    %p164 = scmp.ne.s32.totalorder %s153, %s156
    %p165 = scmp.eq.s32.totalorder %s16, 1
    %p166 = por %p164, %p165
    %p167 = scmp.ne.s32.totalorder %s156, %s157
    %p168 = scmp.eq.s32.totalorder %s16, 0
    %p169 = por %p167, %p168
    %p170 = scmp.ne.s32.totalorder %s156, %s157
    %p171 = scmp.eq.s32.totalorder %s17, 1
    %p172 = por %p170, %p171
    %p174 = scmp.ne.s32.totalorder %s157, %s173
    %p175 = scmp.eq.s32.totalorder %s17, 0
    %p176 = por %p174, %p175
    %p177 = scmp.le.s32.totalorder 1, %s11
    %p178 = scmp.lt.s32.totalorder %s11, 3
    %p179 = pnand %p177, %p178
    %p180 = pneg %p179
    // Predicated region
    $region9: #{positionwise_feed_forward.1} parent=5 // pred_check
      _
    $region10: #{positionwise_feed_forward.1} parent=5 // pred_check_branch
      %182 = sbr.rel (%p179) target = $region12
    $region11: #{positionwise_feed_forward.1} parent=5 // pred_region
      %s183 = ssub.s32 %s11, 1
      // Predicated region
      $region13: #{positionwise_feed_forward.1} parent=11 // pred_check
        %p184 = pneg %p75
      $region14: #{positionwise_feed_forward.1} parent=11 // pred_check_branch
        %186 = sbr.rel (%p184) target = $region16
      $region15: #{positionwise_feed_forward.1} parent=11 // pred_region
        %p187 = scmp.lt.s32.totalorder %s21, 0
        %s188 = scalar_select %p187, %s21, 0
        %s189 = smul.addr %s188, 8
        %s190 = scalar_lea.vmem %s1, %s189
      $region16: #{positionwise_feed_forward.1} parent=11 // pred_fallthru
        _
      // Predicated region
      $region17: #{positionwise_feed_forward.1} parent=11 // pred_check
        %p191 = pneg %p101
      $region18: #{positionwise_feed_forward.1} parent=11 // pred_check_branch
        %193 = sbr.rel (%p191) target = $region20
      $region19: #{positionwise_feed_forward.1} parent=11 // pred_region
        %s194 = smul.u32 16, %s21
        %p195 = scmp.lt.s32.totalorder %s194, 15
        %s196 = scalar_select %p195, %s194, 15
        %s197 = smul.addr %s196, 8
        %s198 = scalar_lea.vmem %s2, %s197
        %s199 = smul.u32 16, %s21
      $region20: #{positionwise_feed_forward.1} parent=11 // pred_fallthru
        _
      // Predicated region
      $region21: #{positionwise_feed_forward.1} parent=11 // pred_check
        %p200 = pneg %p122
      $region22: #{positionwise_feed_forward.1} parent=11 // pred_check_branch
        %202 = sbr.rel (%p200) target = $region24
      $region23: #{positionwise_feed_forward.1} parent=11 // pred_region
        _
      $region24: #{positionwise_feed_forward.1} parent=11 // pred_fallthru
        _
      // Predicated region
      $region25: #{positionwise_feed_forward.1} parent=11 // pred_check
        %p203 = pneg %p143
      $region26: #{positionwise_feed_forward.1} parent=11 // pred_check_branch
        %205 = sbr.rel (%p203) target = $region28
      $region27: #{positionwise_feed_forward.1} parent=11 // pred_region
        _
      $region28: #{positionwise_feed_forward.1} parent=11 // pred_fallthru
        _
    $region12: #{positionwise_feed_forward.1} parent=5 // pred_fallthru
      _
    %p206 = scmp.lt.s32.totalorder %s11, 2
    // Predicated region
    $region29: #{positionwise_feed_forward.1} parent=5 // pred_check
      %p207 = pneg %p206
    $region30: #{positionwise_feed_forward.1} parent=5 // pred_check_branch
      %209 = sbr.rel (%p207) target = $region32
    $region31: #{positionwise_feed_forward.1} parent=5 // pred_region
      // Predicated region
      $region33: #{positionwise_feed_forward.1} parent=31 // pred_check
        %p210 = pneg %p43
      $region34: #{positionwise_feed_forward.1} parent=31 // pred_check_branch
        %212 = sbr.rel (%p210) target = $region36
      $region35: #{positionwise_feed_forward.1} parent=31 // pred_region
        %p213 = scmp.lt.s32.totalorder %s18, 1
        %s214 = scalar_select %p213, %s18, 1
        %s215 = smul.addr %s214, 8
        %s216 = scalar_lea.vmem %s0, %s215
      $region36: #{positionwise_feed_forward.1} parent=31 // pred_fallthru
        _
    $region32: #{positionwise_feed_forward.1} parent=5 // pred_fallthru
      _
    %p217 = scmp.le.s32.totalorder 1, %s11
    %p218 = scmp.lt.s32.totalorder %s11, 3
    %p219 = pnand %p217, %p218
    %p220 = pneg %p219
    // Predicated region
    $region37: #{positionwise_feed_forward.1} parent=5 // pred_check
      _
    $region38: #{positionwise_feed_forward.1} parent=5 // pred_check_branch
      %222 = sbr.rel (%p219) target = $region40
    $region39: #{positionwise_feed_forward.1} parent=5 // pred_region
      %s223 = ssub.s32 %s11, 1
      %p224 = scmp.lt.s32.totalorder %s20, 1
      %s225 = scalar_select %p224, %s20, 1
      %s226 = smul.addr %s225, 8
      %s227 = scalar_lea.vmem %s0, %s226
      %p228 = pneg %p49
      %p229 = pneg %p46
      %p230 = scmp.lt.s32.totalorder %s21, 0
      %s231 = scalar_select %p230, %s21, 0
      %s232 = smul.addr %s231, 8
      %s233 = scalar_lea.vmem %s1, %s232
      %p234 = pneg %p75
      %p235 = pneg %p72
      %s236 = smul.u32 16, %s21
      %p237 = scmp.lt.s32.totalorder %s236, 15
      %s238 = scalar_select %p237, %s236, 15
      %s239 = smul.addr %s238, 8
      %s240 = scalar_lea.vmem %s2, %s239
      %p241 = pneg %p101
      %p242 = pneg %p98
      %p243 = pneg %p122
      %p244 = pneg %p119
      %p245 = pneg %p143
      %p246 = pneg %p140
      %p247 = pneg %p169
      %p248 = pneg %p166
      %p249 = scmp.lt.s32.totalorder %s20, 1
      %s250 = scalar_select %p249, %s20, 1
      %s251 = smul.addr %s250, 8
      %s252 = scalar_lea.vmem %s5, %s251
      %p253 = scmp.lt.s32.totalorder %s20, 1
      %s254 = scalar_select %p253, %s20, 1
      %s255 = smul.addr %s254, 8
      %s256 = scalar_lea.vmem %s0, %s255
      %p257 = scmp.lt.s32.totalorder %s21, 0
      %s258 = scalar_select %p257, %s21, 0
      %s259 = smul.addr %s258, 8
      %s260 = scalar_lea.vmem %s1, %s259
      %s261 = smul.u32 16, %s21
      %p262 = scmp.lt.s32.totalorder %s261, 15
      %s263 = scalar_select %p262, %s261, 15
      %s264 = smul.addr %s263, 8
      %s265 = scalar_lea.vmem %s2, %s264
      %s266 = smul.u32 16, %s21
      %p267 = scmp.lt.s32.totalorder %s20, 1
      %s268 = scalar_select %p267, %s20, 1
      %s269 = smul.addr %s268, 8
      %s270 = scalar_lea.vmem %s5, %s269
      %p271 = scmp.eq.s32.totalorder %s21, 0
      // Predicated region
      $region41: #{positionwise_feed_forward.1} parent=39 // pred_check
        %p272 = pneg %p271
      $region42: #{positionwise_feed_forward.1} parent=39 // pred_check_branch
        %274 = sbr.rel (%p272) target = $region44
      $region43: #{positionwise_feed_forward.1} parent=39 // pred_region
        %275 = vst [vmem:[#allocation2] sm:$0xff] 0.0
      $region44: #{positionwise_feed_forward.1} parent=39 // pred_fallthru
        _
      %v276 = vld [vmem:[%s256] sm:$0xff]
      %v277 = vld [vmem:[%s260] sm:$0xff]
      %v278 = vld [vmem:[%s260 + $0x8] sm:$0xff]
      %v279 = vld [vmem:[%s260 + $0x10] sm:$0xff]
      %v280 = vld [vmem:[%s260 + $0x18] sm:$0xff]
      %v281 = vld [vmem:[%s260 + $0x20] sm:$0xff]
      %v282 = vld [vmem:[%s260 + $0x28] sm:$0xff]
      %v283 = vld [vmem:[%s260 + $0x30] sm:$0xff]
      %v284 = vld [vmem:[%s260 + $0x38] sm:$0xff]
      %v285 = vld [vmem:[%s260 + $0x40] sm:$0xff]
      %v286 = vld [vmem:[%s260 + $0x48] sm:$0xff]
      %v287 = vld [vmem:[%s260 + $0x50] sm:$0xff]
      %v288 = vld [vmem:[%s260 + $0x58] sm:$0xff]
      %v289 = vld [vmem:[%s260 + $0x60] sm:$0xff]
      %v290 = vld [vmem:[%s260 + $0x68] sm:$0xff]
      %v291 = vld [vmem:[%s260 + $0x70] sm:$0xff]
      %v292 = vld [vmem:[%s260 + $0x78] sm:$0xff]
      %293 = vmatprep.subr.mxu0 0.0
      %294 = vmatpush1.msra.mxu0 %v292
      %295 = vmatprep.subr.mxu0 0.0
      %296 = vmatpush1.msra.mxu0 %v291
      %297 = vmatprep.subr.mxu0 0.0
      %298 = vmatpush1.msra.mxu0 %v290
      %299 = vmatprep.subr.mxu0 0.0
      %300 = vmatpush1.msra.mxu0 %v289
      %301 = vmatprep.subr.mxu0 0.0
      %302 = vmatpush1.msra.mxu0 %v288
      %303 = vmatprep.subr.mxu0 0.0
      %304 = vmatpush1.msra.mxu0 %v287
      %305 = vmatprep.subr.mxu0 0.0
      %306 = vmatpush1.msra.mxu0 %v286
      %307 = vmatprep.subr.mxu0 0.0
      %308 = vmatpush1.msra.mxu0 %v285
      %309 = vmatprep.subr.mxu0 0.0
      %310 = vmatpush1.msra.mxu0 %v284
      %311 = vmatprep.subr.mxu0 0.0
      %312 = vmatpush1.msra.mxu0 %v283
      %313 = vmatprep.subr.mxu0 0.0
      %314 = vmatpush1.msra.mxu0 %v282
      %315 = vmatprep.subr.mxu0 0.0
      %316 = vmatpush1.msra.mxu0 %v281
      %317 = vmatprep.subr.mxu0 0.0
      %318 = vmatpush1.msra.mxu0 %v280
      %319 = vmatprep.subr.mxu0 0.0
      %320 = vmatpush1.msra.mxu0 %v279
      %321 = vmatprep.subr.mxu0 0.0
      %322 = vmatpush1.msra.mxu0 %v278
      %323 = vmatprep.subr.mxu0 0.0
      %324 = vmatpush1.msra.mxu0 %v277
      %325 = vmatprep.subr.mxu0 0.0
      %326 = vmatpush2.msra.mxu0 0.0
      %327 = vmatprep.subr.mxu0 0.0
      %328 = vmatpush2.msra.mxu0 0.0
      %329 = vmatprep.subr.mxu0 0.0
      %330 = vmatpush2.msra.mxu0 0.0
      %331 = vmatprep.subr.mxu0 0.0
      %332 = vmatpush2.msra.mxu0 0.0
      %333 = vmatprep.subr.mxu0 0.0
      %334 = vmatpush2.msra.mxu0 0.0
      %335 = vmatprep.subr.mxu0 0.0
      %336 = vmatpush2.msra.mxu0 0.0
      %337 = vmatprep.subr.mxu0 0.0
      %338 = vmatpush2.msra.mxu0 0.0
      %339 = vmatprep.subr.mxu0 0.0
      %340 = vmatpush2.msra.mxu0 0.0
      %341 = vmatprep.subr.mxu0 0.0
      %342 = vmatpush2.msra.mxu0 0.0
      %343 = vmatprep.subr.mxu0 0.0
      %344 = vmatpush2.msra.mxu0 0.0
      %345 = vmatprep.subr.mxu0 0.0
      %346 = vmatpush2.msra.mxu0 0.0
      %347 = vmatprep.subr.mxu0 0.0
      %348 = vmatpush2.msra.mxu0 0.0
      %349 = vmatprep.subr.mxu0 0.0
      %350 = vmatpush2.msra.mxu0 0.0
      %351 = vmatprep.subr.mxu0 0.0
      %352 = vmatpush2.msra.mxu0 0.0
      %353 = vmatprep.subr.mxu0 0.0
      %354 = vmatpush2.msra.mxu0 0.0
      %355 = vmatprep.subr.mxu0 0.0
      %356 = vmatpush2.msra.mxu0 0.0
      %357 = vmatprep.mubr.f32.mxu0 0.0
      %358 = vmatmul.mubr.f32.gmra.mxu0 %v276
      %v359 = vpop.f32.mrf.mxu0
      %v360 = vadd.f32 0.0, %v359
      %v361 = vpop.f32.mrf.mxu0
      %362 = vdwg.mxu0
      %v363 = vmax.f32 %v360, 0.0
      %v364 = vld [vmem:[#allocation2] sm:$0xff]
      %v365 = vld [vmem:[%s265] sm:$0xff]
      %v366 = vld [vmem:[%s265 + $0x8] sm:$0xff]
      %v367 = vld [vmem:[%s265 + $0x10] sm:$0xff]
      %v368 = vld [vmem:[%s265 + $0x18] sm:$0xff]
      %v369 = vld [vmem:[%s265 + $0x20] sm:$0xff]
      %v370 = vld [vmem:[%s265 + $0x28] sm:$0xff]
      %v371 = vld [vmem:[%s265 + $0x30] sm:$0xff]
      %v372 = vld [vmem:[%s265 + $0x38] sm:$0xff]
      %v373 = vld [vmem:[%s265 + $0x40] sm:$0xff]
      %v374 = vld [vmem:[%s265 + $0x48] sm:$0xff]
      %v375 = vld [vmem:[%s265 + $0x50] sm:$0xff]
      %v376 = vld [vmem:[%s265 + $0x58] sm:$0xff]
      %v377 = vld [vmem:[%s265 + $0x60] sm:$0xff]
      %v378 = vld [vmem:[%s265 + $0x68] sm:$0xff]
      %v379 = vld [vmem:[%s265 + $0x70] sm:$0xff]
      %v380 = vld [vmem:[%s265 + $0x78] sm:$0xff]
      %381 = vmatprep.subr.mxu0 0.0
      %382 = vmatpush1.msra.mxu0 %v380
      %383 = vmatprep.subr.mxu0 0.0
      %384 = vmatpush1.msra.mxu0 %v379
      %385 = vmatprep.subr.mxu0 0.0
      %386 = vmatpush1.msra.mxu0 %v378
      %387 = vmatprep.subr.mxu0 0.0
      %388 = vmatpush1.msra.mxu0 %v377
      %389 = vmatprep.subr.mxu0 0.0
      %390 = vmatpush1.msra.mxu0 %v376
      %391 = vmatprep.subr.mxu0 0.0
      %392 = vmatpush1.msra.mxu0 %v375
      %393 = vmatprep.subr.mxu0 0.0
      %394 = vmatpush1.msra.mxu0 %v374
      %395 = vmatprep.subr.mxu0 0.0
      %396 = vmatpush1.msra.mxu0 %v373
      %397 = vmatprep.subr.mxu0 0.0
      %398 = vmatpush1.msra.mxu0 %v372
      %399 = vmatprep.subr.mxu0 0.0
      %400 = vmatpush1.msra.mxu0 %v371
      %401 = vmatprep.subr.mxu0 0.0
      %402 = vmatpush1.msra.mxu0 %v370
      %403 = vmatprep.subr.mxu0 0.0
      %404 = vmatpush1.msra.mxu0 %v369
      %405 = vmatprep.subr.mxu0 0.0
      %406 = vmatpush1.msra.mxu0 %v368
      %407 = vmatprep.subr.mxu0 0.0
      %408 = vmatpush1.msra.mxu0 %v367
      %409 = vmatprep.subr.mxu0 0.0
      %410 = vmatpush1.msra.mxu0 %v366
      %411 = vmatprep.subr.mxu0 0.0
      %412 = vmatpush1.msra.mxu0 %v365
      %413 = vmatprep.subr.mxu0 0.0
      %414 = vmatpush2.msra.mxu0 0.0
      %415 = vmatprep.subr.mxu0 0.0
      %416 = vmatpush2.msra.mxu0 0.0
      %417 = vmatprep.subr.mxu0 0.0
      %418 = vmatpush2.msra.mxu0 0.0
      %419 = vmatprep.subr.mxu0 0.0
      %420 = vmatpush2.msra.mxu0 0.0
      %421 = vmatprep.subr.mxu0 0.0
      %422 = vmatpush2.msra.mxu0 0.0
      %423 = vmatprep.subr.mxu0 0.0
      %424 = vmatpush2.msra.mxu0 0.0
      %425 = vmatprep.subr.mxu0 0.0
      %426 = vmatpush2.msra.mxu0 0.0
      %427 = vmatprep.subr.mxu0 0.0
      %428 = vmatpush2.msra.mxu0 0.0
      %429 = vmatprep.subr.mxu0 0.0
      %430 = vmatpush2.msra.mxu0 0.0
      %431 = vmatprep.subr.mxu0 0.0
      %432 = vmatpush2.msra.mxu0 0.0
      %433 = vmatprep.subr.mxu0 0.0
      %434 = vmatpush2.msra.mxu0 0.0
      %435 = vmatprep.subr.mxu0 0.0
      %436 = vmatpush2.msra.mxu0 0.0
      %437 = vmatprep.subr.mxu0 0.0
      %438 = vmatpush2.msra.mxu0 0.0
      %439 = vmatprep.subr.mxu0 0.0
      %440 = vmatpush2.msra.mxu0 0.0
      %441 = vmatprep.subr.mxu0 0.0
      %442 = vmatpush2.msra.mxu0 0.0
      %443 = vmatprep.subr.mxu0 0.0
      %444 = vmatpush2.msra.mxu0 0.0
      %445 = vmatprep.mubr.f32.mxu0 0.0
      %446 = vmatmul.mubr.f32.gmra.mxu0 %v363
      %v447 = vpop.f32.mrf.mxu0
      %v448 = vadd.f32 0.0, %v447
      %v449 = vpop.f32.mrf.mxu0
      %450 = vdwg.mxu0
      %v451 = vadd.f32 %v364, %v448
      %452 = vst [vmem:[#allocation2] sm:$0xff] %v451
      // Predicated region
      $region45: #{positionwise_feed_forward.1} parent=39 // pred_check
        %p453 = pneg %p271
      $region46: #{positionwise_feed_forward.1} parent=39 // pred_check_branch
        %455 = sbr.rel (%p453) target = $region48
      $region47: #{positionwise_feed_forward.1} parent=39 // pred_region
        %v456 = vld [vmem:[#allocation2] sm:$0xff]
        %v457 = vadd.f32 %v456, %v276
        %458 = vadd.xlane.f32.xlu0 %v457
        %v459 = vpop.xlane.xlu0 %458
        %v460 = vmul.f32 %v459, 0.03125
        %v461 = vmul.f32 %v457, %v457
        %462 = vadd.xlane.f32.xlu0 %v461
        %v463 = vpop.xlane.xlu0 %462
        %v464 = vmul.f32 %v463, 0.03125
        %v465 = vmul.f32 %v460, %v460
        %v466 = vsub.f32 %v464, %v465
        %v467 = vmax.f32 %v466, 0.0
        %v468 = vadd.f32 %v467, 1e-05
        %v469 = vrsqrt.pop %v468
        %v470 = vsub.f32 %v457, %v460
        %v471 = vmul.f32 %v470, %v469
        %v472 = vld [vmem:[%s3] sm:$0x1]
        %v474 = vlaneseq
        %v475 = vshrl.u32 %v474, 7
        %v476 = vsub.s32 0, %v475
        %v477 = vrot.slane %v472, %v476
        %v479 = vmul.f32 %v471, %v477
        %v480 = vld [vmem:[%s4] sm:$0x1]
        %v482 = vlaneseq
        %v483 = vshrl.u32 %v482, 7
        %v484 = vsub.s32 0, %v483
        %v485 = vrot.slane %v480, %v484
        %v487 = vadd.f32 %v479, %v485
        %488 = vst [vmem:[%s270] sm:$0xff] %v487
      $region48: #{positionwise_feed_forward.1} parent=39 // pred_fallthru
        _
      %p489 = scmp.lt.s32.totalorder %s20, 1
      %s490 = scalar_select %p489, %s20, 1
      %s491 = smul.addr %s490, 8
      %s492 = scalar_lea.vmem %s5, %s491
      // Predicated region
      $region49: #{positionwise_feed_forward.1} parent=39 // pred_check
        %p493 = pneg %p166
      $region50: #{positionwise_feed_forward.1} parent=39 // pred_check_branch
        %495 = sbr.rel (%p493) target = $region52
      $region51: #{positionwise_feed_forward.1} parent=39 // pred_region
        _
      $region52: #{positionwise_feed_forward.1} parent=39 // pred_fallthru
        _
    $region40: #{positionwise_feed_forward.1} parent=5 // pred_fallthru
      _
    %p496 = scmp.le.s32.totalorder 2, %s11
    // Predicated region
    $region53: #{positionwise_feed_forward.1} parent=5 // pred_check
      %p497 = pneg %p496
    $region54: #{positionwise_feed_forward.1} parent=5 // pred_check_branch
      %499 = sbr.rel (%p497) target = $region56
    $region55: #{positionwise_feed_forward.1} parent=5 // pred_region
      %s500 = ssub.s32 %s11, 2
      // Predicated region
      $region57: #{positionwise_feed_forward.1} parent=55 // pred_check
        %p501 = pneg %p172
      $region58: #{positionwise_feed_forward.1} parent=55 // pred_check_branch
        %503 = sbr.rel (%p501) target = $region60
      $region59: #{positionwise_feed_forward.1} parent=55 // pred_region
        %p504 = scmp.lt.s32.totalorder %s22, 1
        %s505 = scalar_select %p504, %s22, 1
        %s506 = smul.addr %s505, 8
        %s507 = scalar_lea.vmem %s5, %s506
      $region60: #{positionwise_feed_forward.1} parent=55 // pred_fallthru
        _
    $region56: #{positionwise_feed_forward.1} parent=5 // pred_fallthru
      _
  $region6: #{positionwise_feed_forward.1} parent=0 // loop_footer
    %s15 = sadd.s32 1, %s11
  $region7: #{positionwise_feed_forward.1} parent=0 // loop_footer_branch
    %10 = sbr.rel target = $region3
  $region8: #{positionwise_feed_forward.1} parent=0 // loop_exit
    _

</llo_original>
